<compile_context>
chip_gen: v7x
topology: tpu7x:2x2x1
jax: 0.10.0
libtpu: 0.0.40
codegen_flags: <defaults>
</compile_context>

<pallas_src>
import numpy as np
import jax
import jax.numpy as jnp
from jax.experimental import pallas as pl
from jax.experimental.pallas import tpu as pltpu


# ---------------------------------------------------------------------------
# Deterministic parameter construction (mirrors Blur.__init__ / get_kernel)
# ---------------------------------------------------------------------------
def get_kernel(kernel_type, kernel_width, kernel_parameter, norm=True):
    kernel = np.zeros([kernel_width, kernel_width])
    if kernel_type == 'gauss':
        sigma = kernel_parameter
        center = (kernel_width + 1.0) / 2.0
        sigma_sq = sigma ** 2
        for i in range(1, kernel.shape[0] + 1):
            for j in range(1, kernel.shape[1] + 1):
                di = (i - center) / 2.0
                dj = (j - center) / 2.0
                kernel[i - 1][j - 1] = np.exp(-(di * di + dj * dj) / (2 * sigma_sq))
                kernel[i - 1][j - 1] = kernel[i - 1][j - 1] / (2.0 * np.pi * sigma_sq)
    elif kernel_type == 'circle':
        r = kernel_parameter
        n = kernel_width
        m = kernel_width
        kernel = np.ones((m, n)) / (np.pi * r ** 2)
        x = np.arange(-np.fix(n / 2), np.ceil(n / 2))
        y = np.arange(-np.fix(m / 2), np.ceil(m / 2))
        X, Y = np.meshgrid(x, y)
        mask = X ** 2 + Y ** 2 < r ** 2
        kernel = mask * kernel
    else:
        assert False, 'wrong kernel type'
    if norm:
        kernel /= kernel.sum()
    else:
        kernel = 1 * (kernel > 0)
    return kernel


def make_blur_params(kernel_type, kernel_parameter, kernel_width=None):
    assert kernel_parameter, 'radius or sigma is not specified'
    if kernel_width is None:
        kernel_width = int(2 * kernel_parameter + 8)
    if kernel_width % 2 == 0:
        kernel_width += 1
    kern = get_kernel(kernel_type, kernel_width, kernel_parameter).astype(np.float32)
    a = jnp.array([0.35], dtype=jnp.float32)   # nn.Parameter a
    b = jnp.array([0.6], dtype=jnp.float32)    # nn.Parameter b
    return kern, a, b


# ---------------------------------------------------------------------------
# Pallas kernels
# ---------------------------------------------------------------------------
_N_ACC = 2   # independent partial accumulators (break the serial VALU add chain)


def _tree_sum(accs):
    out = accs[0]
    for a in accs[1:]:
        out = out + a
    return out


def _make_separable_kernel(H, W, K, P, TB, rvec, cvec):
    """Rank-1 (e.g. Gaussian) kernel: horizontal pass then vertical pass."""
    Hp, Wp = H + 2 * P, W + 2 * P

    def kernel(ab_ref, x_ref, o_ref, padw_ref, midp_ref):
        # -- replicate-pad along W into VMEM scratch (fused; no XLA pad pass) --
        padw_ref[:, :, P:P + W] = x_ref[...]
        if P > 0:
            padw_ref[:, :, 0:P] = jnp.broadcast_to(x_ref[:, :, 0:1], (TB, H, P))
            padw_ref[:, :, P + W:Wp] = jnp.broadcast_to(x_ref[:, :, W - 1:W], (TB, H, P))

        # -- pass 1: horizontal 1-D taps (lane-axis shifts) --------------------
        accs = [jnp.zeros((TB, H, W), jnp.float32) for _ in range(_N_ACC)]
        for kj in range(K):
            accs[kj % _N_ACC] = accs[kj % _N_ACC] + cvec[kj] * padw_ref[:, :, kj:kj + W]
        mid = _tree_sum(accs)

        # -- replicate-pad the intermediate along H into second scratch --------
        midp_ref[:, P:P + H, :] = mid
        if P > 0:
            midp_ref[:, 0:P, :] = jnp.broadcast_to(
                midp_ref[:, P:P + 1, :], (TB, P, W))
            midp_ref[:, P + H:Hp, :] = jnp.broadcast_to(
                midp_ref[:, P + H - 1:P + H, :], (TB, P, W))

        # -- pass 2: vertical 1-D taps (sublane-axis shifts) -------------------
        accs = [jnp.zeros((TB, H, W), jnp.float32) for _ in range(_N_ACC)]
        for ki in range(K):
            accs[ki % _N_ACC] = accs[ki % _N_ACC] + rvec[ki] * midp_ref[:, ki:ki + H, :]
        out = _tree_sum(accs)

        o_ref[...] = ab_ref[0] * out + ab_ref[1]

    return kernel


def _make_full_kernel(H, W, K, P, TB, taps):
    """General (non-separable, e.g. 'circle') kernel: K*K taps, zeros skipped."""
    Hp, Wp = H + 2 * P, W + 2 * P

    def kernel(ab_ref, x_ref, o_ref, pad_ref):
        # -- replicate-pad both dims into a single VMEM scratch ----------------
        pad_ref[:, P:P + H, P:P + W] = x_ref[...]
        if P > 0:
            pad_ref[:, P:P + H, 0:P] = jnp.broadcast_to(x_ref[:, :, 0:1], (TB, H, P))
            pad_ref[:, P:P + H, P + W:Wp] = jnp.broadcast_to(
                x_ref[:, :, W - 1:W], (TB, H, P))
            # top/bottom rows replicate the first/last fully-padded row
            pad_ref[:, 0:P, :] = jnp.broadcast_to(
                pad_ref[:, P:P + 1, :], (TB, P, Wp))
            pad_ref[:, P + H:Hp, :] = jnp.broadcast_to(
                pad_ref[:, P + H - 1:P + H, :], (TB, P, Wp))

        accs = [jnp.zeros((TB, H, W), jnp.float32) for _ in range(_N_ACC)]
        idx = 0
        for ki in range(K):
            for kj in range(K):
                t = taps[ki][kj]
                if t == 0.0:
                    continue  # 'circle' kernel has exact zeros outside the disk
                accs[idx % _N_ACC] = (
                    accs[idx % _N_ACC] + t * pad_ref[:, ki:ki + H, kj:kj + W])
                idx += 1
        out = _tree_sum(accs)
        o_ref[...] = ab_ref[0] * out + ab_ref[1]

    return kernel


# ---------------------------------------------------------------------------
# Wrapper
# ---------------------------------------------------------------------------
def _choose_plane_tile(nc, h, w, hp, wp, budget_bytes=8 * 1024 * 1024):
    """Largest divisor of nc whose per-step VMEM footprint (double-buffered
    in/out blocks + scratches) fits a conservative budget (safe on v7x's
    smaller VMEM), while keeping >= 2 grid steps so both v7x TCs get work."""
    best = 1
    for tb in range(1, nc + 1):
        if nc % tb:
            continue
        need = 4 * (2 * tb * h * w         # input block, double-buffered
                    + 2 * tb * h * w       # output block, double-buffered
                    + tb * hp * wp         # worst-case padding scratch
                    + tb * h * wp          # padw scratch (separable path)
                    + tb * hp * w)         # midp scratch (separable path)
        if need > budget_bytes:
            continue
        if nc >= 2 and nc // tb < 2:
            continue
        best = tb
    return best


def blur_forward(x, kern, a, b):
    """x: (N, C, H, W) float32 NCHW. Returns a * depthwise_blur(x) + b."""
    N, C, H, W = x.shape
    K = int(kern.shape[0])
    P = (K - 1) // 2
    Hp, Wp = H + 2 * P, W + 2 * P
    NC = N * C

    xr = x.reshape(NC, H, W).astype(jnp.float32)
    ab = jnp.concatenate([a, b]).astype(jnp.float32)   # a, b scalars -> SMEM

    TB = _choose_plane_tile(NC, H, W, Hp, Wp)
    G = NC // TB

    # Compile-time separability test (gauss kernel is rank-1 -> 2K taps, not K^2).
    k64 = np.asarray(kern, dtype=np.float64)
    U, S, Vt = np.linalg.svd(k64)
    rvec = U[:, 0] * S[0]
    cvec = Vt[0, :]
    if rvec.sum() < 0:
        rvec, cvec = -rvec, -cvec
    recon_err = np.max(np.abs(np.outer(rvec, cvec) - k64))
    separable = recon_err <= 2e-6 * max(float(np.max(np.abs(k64))), 1e-30)

    if separable:
        kernel_fn = _make_separable_kernel(
            H, W, K, P, TB, [float(v) for v in rvec], [float(v) for v in cvec])
        scratch_shapes = [pltpu.VMEM((TB, H, Wp), jnp.float32),
                          pltpu.VMEM((TB, Hp, W), jnp.float32)]
    else:
        taps = [[float(k64[i, j]) for j in range(K)] for i in range(K)]
        kernel_fn = _make_full_kernel(H, W, K, P, TB, taps)
        scratch_shapes = [pltpu.VMEM((TB, Hp, Wp), jnp.float32)]

    out = pl.pallas_call(
        kernel_fn,
        out_shape=jax.ShapeDtypeStruct((NC, H, W), jnp.float32),
        grid=(G,),
        in_specs=[
            pl.BlockSpec(memory_space=pltpu.SMEM),            # (2,) a, b scalars
            pl.BlockSpec((TB, H, W), lambda i: (i, 0, 0)),    # TB planes / step
        ],
        out_specs=pl.BlockSpec((TB, H, W), lambda i: (i, 0, 0)),
        scratch_shapes=scratch_shapes,
        compiler_params=pltpu.CompilerParams(
            dimension_semantics=("parallel",)),
    )(ab, xr)

    return out.reshape(N, C, H, W)


# ---------------------------------------------------------------------------
# Pure-JAX reference (same math, no Pallas) for a correctness sanity check
# ---------------------------------------------------------------------------
def blur_reference(x, kern, a, b):
    N, C, H, W = x.shape
    K = int(kern.shape[0])
    P = (K - 1) // 2
    xp = jnp.pad(x, ((0, 0), (0, 0), (P, P), (P, P)), mode='edge')
    acc = jnp.zeros_like(x)
    for ki in range(K):
        for kj in range(K):
            acc = acc + float(kern[ki, kj]) * xp[:, :, ki:ki + H, kj:kj + W]
    return a[0] * acc + b[0]


if __name__ == "__main__":
    n_planes = 4
    kernel_type = 'gauss'
    kernel_parameter = 1.0      # sigma -> kernel_width = int(2*1+8)=10 -> 11 (odd)

    kern, a, b = make_blur_params(kernel_type, kernel_parameter)

    key = jax.random.PRNGKey(0)
    x = jax.random.normal(key, (2, n_planes, 16, 16), dtype=jnp.float32)

    out = blur_forward(x, kern, a, b)
    out = jax.block_until_ready(out)

    ref = blur_reference(x, kern, a, b)
    assert out.shape == (2, n_planes, 16, 16)
    assert out.dtype == jnp.float32
    np.testing.assert_allclose(np.asarray(out), np.asarray(ref), rtol=1e-5, atol=1e-5)

    print("KERNEL_OK")
</pallas_src>

<mosaic_0001>
module attributes {stable_mosaic.version = 11 : i64} {
  func.func @kernel(%arg0: i32, %arg1: memref<2xf32, #tpu.memory_space<smem>>, %arg2: memref<4x16x16xf32, #tpu.memory_space<vmem>>, %arg3: memref<4x16x16xf32, #tpu.memory_space<vmem>>, %arg4: memref<4x16x26xf32, #tpu.memory_space<vmem>>, %arg5: memref<4x26x16xf32, #tpu.memory_space<vmem>>) attributes {dimension_semantics = [#tpu.dimension_semantics<parallel>], iteration_bounds = array<i64: 2>, scalar_prefetch = 0 : i64, scratch_operands = 2 : i64, tpu.core_type = #tpu.core_type<tc>, window_params = [{transform_indices = @transform_0, window_bounds = array<i64: 2>}, {transform_indices = @transform_1, window_bounds = array<i64: 4, 16, 16>}, {transform_indices = @transform_2, window_bounds = array<i64: 4, 16, 16>}]} {
    %c0 = arith.constant 0 : index
    %c0_0 = arith.constant 0 : index
    %c0_1 = arith.constant 0 : index
    %0 = vector.load %arg2[%c0, %c0_0, %c0_1] : memref<4x16x16xf32, #tpu.memory_space<vmem>>, vector<4x16x16xf32>
    %c0_2 = arith.constant 0 : index
    %c0_3 = arith.constant 0 : index
    %c5 = arith.constant 5 : index
    %1 = vector.load %arg4[%c0_2, %c0_3, %c5] : memref<4x16x26xf32, #tpu.memory_space<vmem>>, vector<4x16x16xf32>
    tpu.vector_store %arg4[%c0_2, %c0_3, %c5], %0 {strides = array<i32>} : memref<4x16x26xf32, #tpu.memory_space<vmem>>, vector<4x16x16xf32>,
    %c0_4 = arith.constant 0 : index
    %c0_5 = arith.constant 0 : index
    %c0_6 = arith.constant 0 : index
    %2 = vector.load %arg2[%c0_4, %c0_5, %c0_6] : memref<4x16x16xf32, #tpu.memory_space<vmem>>, vector<4x16x1xf32>
    %3 = vector.shape_cast %2 : vector<4x16x1xf32> to vector<4x16x1xf32>
    %4 = vector.broadcast %3 : vector<4x16x1xf32> to vector<4x16x5xf32>
    %c0_7 = arith.constant 0 : index
    %c0_8 = arith.constant 0 : index
    %c0_9 = arith.constant 0 : index
    %5 = vector.load %arg4[%c0_7, %c0_8, %c0_9] : memref<4x16x26xf32, #tpu.memory_space<vmem>>, vector<4x16x5xf32>
    tpu.vector_store %arg4[%c0_7, %c0_8, %c0_9], %4 {strides = array<i32>} : memref<4x16x26xf32, #tpu.memory_space<vmem>>, vector<4x16x5xf32>,
    %c0_10 = arith.constant 0 : index
    %c0_11 = arith.constant 0 : index
    %c15 = arith.constant 15 : index
    %6 = vector.load %arg2[%c0_10, %c0_11, %c15] : memref<4x16x16xf32, #tpu.memory_space<vmem>>, vector<4x16x1xf32>
    %7 = vector.shape_cast %6 : vector<4x16x1xf32> to vector<4x16x1xf32>
    %8 = vector.broadcast %7 : vector<4x16x1xf32> to vector<4x16x5xf32>
    %c0_12 = arith.constant 0 : index
    %c0_13 = arith.constant 0 : index
    %c21 = arith.constant 21 : index
    %9 = vector.load %arg4[%c0_12, %c0_13, %c21] : memref<4x16x26xf32, #tpu.memory_space<vmem>>, vector<4x16x5xf32>
    tpu.vector_store %arg4[%c0_12, %c0_13, %c21], %8 {strides = array<i32>} : memref<4x16x26xf32, #tpu.memory_space<vmem>>, vector<4x16x5xf32>,
    %cst = arith.constant 0.000000e+00 : f32
    %10 = vector.broadcast %cst : f32 to vector<4x16x16xf32>
    %cst_14 = arith.constant 0.000000e+00 : f32
    %11 = vector.broadcast %cst_14 : f32 to vector<4x16x16xf32>
    %c0_15 = arith.constant 0 : index
    %c0_16 = arith.constant 0 : index
    %c0_17 = arith.constant 0 : index
    %12 = vector.load %arg4[%c0_15, %c0_16, %c0_17] : memref<4x16x26xf32, #tpu.memory_space<vmem>>, vector<4x16x16xf32>
    %cst_18 = arith.constant 0.0233368911 : f32
    %13 = vector.broadcast %cst_18 : f32 to vector<4x16x16xf32>
    %14 = arith.mulf %13, %12 : vector<4x16x16xf32>
    %15 = arith.addf %10, %14 : vector<4x16x16xf32>
    %c0_19 = arith.constant 0 : index
    %c0_20 = arith.constant 0 : index
    %c1 = arith.constant 1 : index
    %16 = vector.load %arg4[%c0_19, %c0_20, %c1] : memref<4x16x26xf32, #tpu.memory_space<vmem>>, vector<4x16x16xf32>
    %cst_21 = arith.constant 0.0718826875 : f32
    %17 = vector.broadcast %cst_21 : f32 to vector<4x16x16xf32>
    %18 = arith.mulf %17, %16 : vector<4x16x16xf32>
    %19 = arith.addf %11, %18 : vector<4x16x16xf32>
    %c0_22 = arith.constant 0 : index
    %c0_23 = arith.constant 0 : index
    %c2 = arith.constant 2 : index
    %20 = vector.load %arg4[%c0_22, %c0_23, %c2] : memref<4x16x26xf32, #tpu.memory_space<vmem>>, vector<4x16x16xf32>
    %cst_24 = arith.constant 0.172437608 : f32
    %21 = vector.broadcast %cst_24 : f32 to vector<4x16x16xf32>
    %22 = arith.mulf %21, %20 : vector<4x16x16xf32>
    %23 = arith.addf %15, %22 : vector<4x16x16xf32>
    %c0_25 = arith.constant 0 : index
    %c0_26 = arith.constant 0 : index
    %c3 = arith.constant 3 : index
    %24 = vector.load %arg4[%c0_25, %c0_26, %c3] : memref<4x16x26xf32, #tpu.memory_space<vmem>>, vector<4x16x16xf32>
    %cst_27 = arith.constant 0.322155833 : f32
    %25 = vector.broadcast %cst_27 : f32 to vector<4x16x16xf32>
    %26 = arith.mulf %25, %24 : vector<4x16x16xf32>
    %27 = arith.addf %19, %26 : vector<4x16x16xf32>
    %c0_28 = arith.constant 0 : index
    %c0_29 = arith.constant 0 : index
    %c4 = arith.constant 4 : index
    %28 = vector.load %arg4[%c0_28, %c0_29, %c4] : memref<4x16x26xf32, #tpu.memory_space<vmem>>, vector<4x16x16xf32>
    %cst_30 = arith.constant 4.687340e-01 : f32
    %29 = vector.broadcast %cst_30 : f32 to vector<4x16x16xf32>
    %30 = arith.mulf %29, %28 : vector<4x16x16xf32>
    %31 = arith.addf %23, %30 : vector<4x16x16xf32>
    %c0_31 = arith.constant 0 : index
    %c0_32 = arith.constant 0 : index
    %c5_33 = arith.constant 5 : index
    %32 = vector.load %arg4[%c0_31, %c0_32, %c5_33] : memref<4x16x26xf32, #tpu.memory_space<vmem>>, vector<4x16x16xf32>
    %cst_34 = arith.constant 0.531145215 : f32
    %33 = vector.broadcast %cst_34 : f32 to vector<4x16x16xf32>
    %34 = arith.mulf %33, %32 : vector<4x16x16xf32>
    %35 = arith.addf %27, %34 : vector<4x16x16xf32>
    %c0_35 = arith.constant 0 : index
    %c0_36 = arith.constant 0 : index
    %c6 = arith.constant 6 : index
    %36 = vector.load %arg4[%c0_35, %c0_36, %c6] : memref<4x16x26xf32, #tpu.memory_space<vmem>>, vector<4x16x16xf32>
    %cst_37 = arith.constant 4.687340e-01 : f32
    %37 = vector.broadcast %cst_37 : f32 to vector<4x16x16xf32>
    %38 = arith.mulf %37, %36 : vector<4x16x16xf32>
    %39 = arith.addf %31, %38 : vector<4x16x16xf32>
    %c0_38 = arith.constant 0 : index
    %c0_39 = arith.constant 0 : index
    %c7 = arith.constant 7 : index
    %40 = vector.load %arg4[%c0_38, %c0_39, %c7] : memref<4x16x26xf32, #tpu.memory_space<vmem>>, vector<4x16x16xf32>
    %cst_40 = arith.constant 0.322155833 : f32
    %41 = vector.broadcast %cst_40 : f32 to vector<4x16x16xf32>
    %42 = arith.mulf %41, %40 : vector<4x16x16xf32>
    %43 = arith.addf %35, %42 : vector<4x16x16xf32>
    %c0_41 = arith.constant 0 : index
    %c0_42 = arith.constant 0 : index
    %c8 = arith.constant 8 : index
    %44 = vector.load %arg4[%c0_41, %c0_42, %c8] : memref<4x16x26xf32, #tpu.memory_space<vmem>>, vector<4x16x16xf32>
    %cst_43 = arith.constant 0.172437608 : f32
    %45 = vector.broadcast %cst_43 : f32 to vector<4x16x16xf32>
    %46 = arith.mulf %45, %44 : vector<4x16x16xf32>
    %47 = arith.addf %39, %46 : vector<4x16x16xf32>
    %c0_44 = arith.constant 0 : index
    %c0_45 = arith.constant 0 : index
    %c9 = arith.constant 9 : index
    %48 = vector.load %arg4[%c0_44, %c0_45, %c9] : memref<4x16x26xf32, #tpu.memory_space<vmem>>, vector<4x16x16xf32>
    %cst_46 = arith.constant 0.0718826875 : f32
    %49 = vector.broadcast %cst_46 : f32 to vector<4x16x16xf32>
    %50 = arith.mulf %49, %48 : vector<4x16x16xf32>
    %51 = arith.addf %43, %50 : vector<4x16x16xf32>
    %c0_47 = arith.constant 0 : index
    %c0_48 = arith.constant 0 : index
    %c10 = arith.constant 10 : index
    %52 = vector.load %arg4[%c0_47, %c0_48, %c10] : memref<4x16x26xf32, #tpu.memory_space<vmem>>, vector<4x16x16xf32>
    %cst_49 = arith.constant 0.0233368911 : f32
    %53 = vector.broadcast %cst_49 : f32 to vector<4x16x16xf32>
    %54 = arith.mulf %53, %52 : vector<4x16x16xf32>
    %55 = arith.addf %47, %54 : vector<4x16x16xf32>
    %56 = arith.addf %55, %51 : vector<4x16x16xf32>
    %c0_50 = arith.constant 0 : index
    %c5_51 = arith.constant 5 : index
    %c0_52 = arith.constant 0 : index
    %57 = vector.load %arg5[%c0_50, %c5_51, %c0_52] : memref<4x26x16xf32, #tpu.memory_space<vmem>>, vector<4x16x16xf32>
    tpu.vector_store %arg5[%c0_50, %c5_51, %c0_52], %56 {strides = array<i32>} : memref<4x26x16xf32, #tpu.memory_space<vmem>>, vector<4x16x16xf32>,
    %c0_53 = arith.constant 0 : index
    %c5_54 = arith.constant 5 : index
    %c0_55 = arith.constant 0 : index
    %58 = vector.load %arg5[%c0_53, %c5_54, %c0_55] : memref<4x26x16xf32, #tpu.memory_space<vmem>>, vector<4x1x16xf32>
    %59 = vector.shape_cast %58 : vector<4x1x16xf32> to vector<4x1x16xf32>
    %60 = vector.broadcast %59 : vector<4x1x16xf32> to vector<4x5x16xf32>
    %c0_56 = arith.constant 0 : index
    %c0_57 = arith.constant 0 : index
    %c0_58 = arith.constant 0 : index
    %61 = vector.load %arg5[%c0_56, %c0_57, %c0_58] : memref<4x26x16xf32, #tpu.memory_space<vmem>>, vector<4x5x16xf32>
    tpu.vector_store %arg5[%c0_56, %c0_57, %c0_58], %60 {strides = array<i32>} : memref<4x26x16xf32, #tpu.memory_space<vmem>>, vector<4x5x16xf32>,
    %c0_59 = arith.constant 0 : index
    %c20 = arith.constant 20 : index
    %c0_60 = arith.constant 0 : index
    %62 = vector.load %arg5[%c0_59, %c20, %c0_60] : memref<4x26x16xf32, #tpu.memory_space<vmem>>, vector<4x1x16xf32>
    %63 = vector.shape_cast %62 : vector<4x1x16xf32> to vector<4x1x16xf32>
    %64 = vector.broadcast %63 : vector<4x1x16xf32> to vector<4x5x16xf32>
    %c0_61 = arith.constant 0 : index
    %c21_62 = arith.constant 21 : index
    %c0_63 = arith.constant 0 : index
    %65 = vector.load %arg5[%c0_61, %c21_62, %c0_63] : memref<4x26x16xf32, #tpu.memory_space<vmem>>, vector<4x5x16xf32>
    tpu.vector_store %arg5[%c0_61, %c21_62, %c0_63], %64 {strides = array<i32>} : memref<4x26x16xf32, #tpu.memory_space<vmem>>, vector<4x5x16xf32>,
    %cst_64 = arith.constant 0.000000e+00 : f32
    %66 = vector.broadcast %cst_64 : f32 to vector<4x16x16xf32>
    %cst_65 = arith.constant 0.000000e+00 : f32
    %67 = vector.broadcast %cst_65 : f32 to vector<4x16x16xf32>
    %c0_66 = arith.constant 0 : index
    %c0_67 = arith.constant 0 : index
    %c0_68 = arith.constant 0 : index
    %68 = vector.load %arg5[%c0_66, %c0_67, %c0_68] : memref<4x26x16xf32, #tpu.memory_space<vmem>>, vector<4x16x16xf32>
    %cst_69 = arith.constant 0.00332758063 : f32
    %69 = vector.broadcast %cst_69 : f32 to vector<4x16x16xf32>
    %70 = arith.mulf %69, %68 : vector<4x16x16xf32>
    %71 = arith.addf %66, %70 : vector<4x16x16xf32>
    %c0_70 = arith.constant 0 : index
    %c1_71 = arith.constant 1 : index
    %c0_72 = arith.constant 0 : index
    %72 = vector.load %arg5[%c0_70, %c1_71, %c0_72] : memref<4x26x16xf32, #tpu.memory_space<vmem>>, vector<4x16x16xf32>
    %cst_73 = arith.constant 0.0102496697 : f32
    %73 = vector.broadcast %cst_73 : f32 to vector<4x16x16xf32>
    %74 = arith.mulf %73, %72 : vector<4x16x16xf32>
    %75 = arith.addf %67, %74 : vector<4x16x16xf32>
    %c0_74 = arith.constant 0 : index
    %c2_75 = arith.constant 2 : index
    %c0_76 = arith.constant 0 : index
    %76 = vector.load %arg5[%c0_74, %c2_75, %c0_76] : memref<4x26x16xf32, #tpu.memory_space<vmem>>, vector<4x16x16xf32>
    %cst_77 = arith.constant 0.0245876797 : f32
    %77 = vector.broadcast %cst_77 : f32 to vector<4x16x16xf32>
    %78 = arith.mulf %77, %76 : vector<4x16x16xf32>
    %79 = arith.addf %71, %78 : vector<4x16x16xf32>
    %c0_78 = arith.constant 0 : index
    %c3_79 = arith.constant 3 : index
    %c0_80 = arith.constant 0 : index
    %80 = vector.load %arg5[%c0_78, %c3_79, %c0_80] : memref<4x26x16xf32, #tpu.memory_space<vmem>>, vector<4x16x16xf32>
    %cst_81 = arith.constant 0.045935832 : f32
    %81 = vector.broadcast %cst_81 : f32 to vector<4x16x16xf32>
    %82 = arith.mulf %81, %80 : vector<4x16x16xf32>
    %83 = arith.addf %75, %82 : vector<4x16x16xf32>
    %c0_82 = arith.constant 0 : index
    %c4_83 = arith.constant 4 : index
    %c0_84 = arith.constant 0 : index
    %84 = vector.load %arg5[%c0_82, %c4_83, %c0_84] : memref<4x26x16xf32, #tpu.memory_space<vmem>>, vector<4x16x16xf32>
    %cst_85 = arith.constant 0.0668362379 : f32
    %85 = vector.broadcast %cst_85 : f32 to vector<4x16x16xf32>
    %86 = arith.mulf %85, %84 : vector<4x16x16xf32>
    %87 = arith.addf %79, %86 : vector<4x16x16xf32>
    %c0_86 = arith.constant 0 : index
    %c5_87 = arith.constant 5 : index
    %c0_88 = arith.constant 0 : index
    %88 = vector.load %arg5[%c0_86, %c5_87, %c0_88] : memref<4x26x16xf32, #tpu.memory_space<vmem>>, vector<4x16x16xf32>
    %cst_89 = arith.constant 0.0757353827 : f32
    %89 = vector.broadcast %cst_89 : f32 to vector<4x16x16xf32>
    %90 = arith.mulf %89, %88 : vector<4x16x16xf32>
    %91 = arith.addf %83, %90 : vector<4x16x16xf32>
    %c0_90 = arith.constant 0 : index
    %c6_91 = arith.constant 6 : index
    %c0_92 = arith.constant 0 : index
    %92 = vector.load %arg5[%c0_90, %c6_91, %c0_92] : memref<4x26x16xf32, #tpu.memory_space<vmem>>, vector<4x16x16xf32>
    %cst_93 = arith.constant 0.0668362379 : f32
    %93 = vector.broadcast %cst_93 : f32 to vector<4x16x16xf32>
    %94 = arith.mulf %93, %92 : vector<4x16x16xf32>
    %95 = arith.addf %87, %94 : vector<4x16x16xf32>
    %c0_94 = arith.constant 0 : index
    %c7_95 = arith.constant 7 : index
    %c0_96 = arith.constant 0 : index
    %96 = vector.load %arg5[%c0_94, %c7_95, %c0_96] : memref<4x26x16xf32, #tpu.memory_space<vmem>>, vector<4x16x16xf32>
    %cst_97 = arith.constant 0.045935832 : f32
    %97 = vector.broadcast %cst_97 : f32 to vector<4x16x16xf32>
    %98 = arith.mulf %97, %96 : vector<4x16x16xf32>
    %99 = arith.addf %91, %98 : vector<4x16x16xf32>
    %c0_98 = arith.constant 0 : index
    %c8_99 = arith.constant 8 : index
    %c0_100 = arith.constant 0 : index
    %100 = vector.load %arg5[%c0_98, %c8_99, %c0_100] : memref<4x26x16xf32, #tpu.memory_space<vmem>>, vector<4x16x16xf32>
    %cst_101 = arith.constant 0.0245876797 : f32
    %101 = vector.broadcast %cst_101 : f32 to vector<4x16x16xf32>
    %102 = arith.mulf %101, %100 : vector<4x16x16xf32>
    %103 = arith.addf %95, %102 : vector<4x16x16xf32>
    %c0_102 = arith.constant 0 : index
    %c9_103 = arith.constant 9 : index
    %c0_104 = arith.constant 0 : index
    %104 = vector.load %arg5[%c0_102, %c9_103, %c0_104] : memref<4x26x16xf32, #tpu.memory_space<vmem>>, vector<4x16x16xf32>
    %cst_105 = arith.constant 0.0102496697 : f32
    %105 = vector.broadcast %cst_105 : f32 to vector<4x16x16xf32>
    %106 = arith.mulf %105, %104 : vector<4x16x16xf32>
    %107 = arith.addf %99, %106 : vector<4x16x16xf32>
    %c0_106 = arith.constant 0 : index
    %c10_107 = arith.constant 10 : index
    %c0_108 = arith.constant 0 : index
    %108 = vector.load %arg5[%c0_106, %c10_107, %c0_108] : memref<4x26x16xf32, #tpu.memory_space<vmem>>, vector<4x16x16xf32>
    %cst_109 = arith.constant 0.00332758063 : f32
    %109 = vector.broadcast %cst_109 : f32 to vector<4x16x16xf32>
    %110 = arith.mulf %109, %108 : vector<4x16x16xf32>
    %111 = arith.addf %103, %110 : vector<4x16x16xf32>
    %112 = arith.addf %111, %107 : vector<4x16x16xf32>
    %c0_110 = arith.constant 0 : index
    %113 = memref.load %arg1[%c0_110] : memref<2xf32, #tpu.memory_space<smem>>
    %114 = vector.broadcast %113 : f32 to vector<4x16x16xf32>
    %115 = arith.mulf %114, %112 : vector<4x16x16xf32>
    %c1_111 = arith.constant 1 : index
    %116 = memref.load %arg1[%c1_111] : memref<2xf32, #tpu.memory_space<smem>>
    %117 = vector.broadcast %116 : f32 to vector<4x16x16xf32>
    %118 = arith.addf %115, %117 : vector<4x16x16xf32>
    %c0_112 = arith.constant 0 : index
    %c0_113 = arith.constant 0 : index
    %c0_114 = arith.constant 0 : index
    %119 = vector.load %arg3[%c0_112, %c0_113, %c0_114] : memref<4x16x16xf32, #tpu.memory_space<vmem>>, vector<4x16x16xf32>
    tpu.vector_store %arg3[%c0_112, %c0_113, %c0_114], %118 {strides = array<i32>} : memref<4x16x16xf32, #tpu.memory_space<vmem>>, vector<4x16x16xf32>,
    return
  }
  func.func @transform_0(%arg0: i32) -> i32 {
    %c0_i32 = arith.constant 0 : i32
    %c0_i32_0 = arith.constant 0 : i32
    return %c0_i32 : i32
  }
  func.func @transform_1(%arg0: i32) -> (i32, i32, i32) {
    %c0_i32 = arith.constant 0 : i32
    %c0_i32_0 = arith.constant 0 : i32
    %c0_i32_1 = arith.constant 0 : i32
    return %arg0, %c0_i32, %c0_i32_0 : i32, i32, i32
  }
  func.func @transform_2(%arg0: i32) -> (i32, i32, i32) {
    %c0_i32 = arith.constant 0 : i32
    %c0_i32_0 = arith.constant 0 : i32
    %c0_i32_1 = arith.constant 0 : i32
    return %arg0, %c0_i32, %c0_i32_0 : i32, i32, i32
  }
}

</mosaic_0001>

<llo_original>
// kernel: tpu_custom_call.1
$region0: #{tpu_custom_call.1}
  #allocation0 [shape = 'u32[]', space=smem, size = 0x4, offset = 0x4, fixed_abs, tag = 'smem constant byte address 0x4 - core index']
  #allocation1 [shape = 'u32[144,128]{1,0:T(1,128)}', space=vmem, size = 0x12000, scoped, tag = 'internal scratch']
  #allocation2 [shape = 'f32[4,16,26]{2,1,0:T(8,128)}', space=vmem, size = 0x8000, scoped, tag = 'scratch operand']
  #allocation3 [shape = 'f32[4,26,16]{2,1,0:T(8,128)}', space=vmem, size = 0x10000, scoped, tag = 'scratch operand']
  %s0 = inlined_call_operand.hbm [shape: f32[2], index: 0, kind: input, shape index: {}]
  %s1 = inlined_call_operand.hbm [shape: f32[8,16,16], index: 1, kind: input, shape index: {}]
  %s2 = inlined_call_operand.hbm [shape: f32[8,16,16], index: 2, kind: output, shape index: {}]
  %s3 = sld [smem:[#allocation0]]
  $region49: #{tpu_custom_call.1} parent=0
    _
  %s5 = ssub.s32 1, %s3
  %s6 = scalar_select 0, %s5, %s3
  $region1: #{tpu_custom_call.1} parent=0
    #allocation4 [shape = 'u8[512]{0}', space=smem, size = 0x200, scoped, tag = 'input window, operand 0, single buffered']
    #allocation5 [shape = 's32[2]{0}', space=sflag, size = 0x8, scoped, tag = 'scoped memory for tpu_custom_call.1']
    #allocation6 [shape = 's32[2]{0}', space=sflag, size = 0x8, scoped, tag = 'scoped memory for tpu_custom_call.1']
    #allocation7 [shape = 's32[2]{0}', space=sflag, size = 0x8, scoped, tag = 'scoped memory for tpu_custom_call.1']
    #allocation8 [shape = 'u8[65536]{0}', space=vmem, size = 0x10000, scoped, tag = 'input window, operand 1']
    #allocation9 [shape = 'u8[65536]{0}', space=vmem, size = 0x10000, scoped, tag = 'output window, operand 0']
    %7 = vsyncpa [#allocation7], 0
    %8 = vsyncpa [#allocation5], 0
    %s9 = scalar_lea.sflag [#allocation5], 1
    %10 = vsyncpa %s9, 0
    %11 = vsyncpa [#allocation6], 0
    %s12 = scalar_lea.sflag [#allocation6], 1
    %13 = vsyncpa %s12, 0
    loop: start=0, step=1, limit=4
    $region2: #{tpu_custom_call.1} parent=1 // loop_pre_header
      _
    $region3: #{tpu_custom_call.1} parent=1 // loop_header
      %s15 = sphi 0, %s19
      %p16 = scmp.ge.s32.totalorder %s15, 4
      %s23 = sphi 0, %s23
      %s25 = sphi 0, %s23
      %s26 = sphi 0, %s25
      %s40 = sphi 0, %s26
      %s46 = sphi 0, %s48
      %s49 = sphi 0, %s46
      %s50 = sphi 0, %s49
      %s66 = sphi 0, %s50
      %s72 = sphi 0, %s74
      %s75 = sphi 0, %s72
      %s76 = sphi 0, %s75
      %s92 = sphi 0, %s76
    $region4: #{tpu_custom_call.1} parent=1 // loop_header_branch
      %18 = sbr.rel (%p16) target = $region8
    $region5: #{tpu_custom_call.1} parent=1 // loop_body
      %s20 = ssub.s32 %s15, 1
      %s21 = ssub.s32 %s15, 2
      %s22 = sadd.s32 %s15, 1
      %s24 = sadd.s32 %s23, 1
      %p27 = scmp.eq.s32.totalorder %s15, 1
      %p28 = scmp.ne.s32.totalorder %s23, %s25
      %p29 = scmp.eq.s32.totalorder %s15, 0
      %p30 = por %p28, %p29
      %p31 = scmp.ne.s32.totalorder %s23, %s25
      %p32 = scmp.eq.s32.totalorder %s20, 1
      %p33 = por %p31, %p32
      %p34 = scmp.ne.s32.totalorder %s25, %s26
      %p35 = scmp.eq.s32.totalorder %s20, 0
      %p36 = por %p34, %p35
      %p37 = scmp.ne.s32.totalorder %s25, %s26
      %p38 = scmp.eq.s32.totalorder %s21, 1
      %p39 = por %p37, %p38
      %p41 = scmp.ne.s32.totalorder %s26, %s40
      %p42 = scmp.eq.s32.totalorder %s21, 0
      %p43 = por %p41, %p42
      %s44 = ssub.s32 %s15, %s22
      %p45 = scmp.eq.s32.totalorder %s44, 0
      %s47 = sadd.s32 %s46, 1
      %s48 = scalar_select %p45, %s46, %s47
      %p51 = pneg %p45
      %p52 = scmp.eq.s32.totalorder %s15, 1
      %p53 = por %p51, %p52
      %p54 = scmp.ne.s32.totalorder %s46, %s49
      %p55 = scmp.eq.s32.totalorder %s15, 0
      %p56 = por %p54, %p55
      %p57 = scmp.ne.s32.totalorder %s46, %s49
      %p58 = scmp.eq.s32.totalorder %s20, 1
      %p59 = por %p57, %p58
      %p60 = scmp.ne.s32.totalorder %s49, %s50
      %p61 = scmp.eq.s32.totalorder %s20, 0
      %p62 = por %p60, %p61
      %p63 = scmp.ne.s32.totalorder %s49, %s50
      %p64 = scmp.eq.s32.totalorder %s21, 1
      %p65 = por %p63, %p64
      %p67 = scmp.ne.s32.totalorder %s50, %s66
      %p68 = scmp.eq.s32.totalorder %s21, 0
      %p69 = por %p67, %p68
      %s70 = ssub.s32 %s15, %s22
      %p71 = scmp.eq.s32.totalorder %s70, 0
      %s73 = sadd.s32 %s72, 1
      %s74 = scalar_select %p71, %s72, %s73
      %p77 = pneg %p71
      %p78 = scmp.eq.s32.totalorder %s15, 1
      %p79 = por %p77, %p78
      %p80 = scmp.ne.s32.totalorder %s72, %s75
      %p81 = scmp.eq.s32.totalorder %s15, 0
      %p82 = por %p80, %p81
      %p83 = scmp.ne.s32.totalorder %s72, %s75
      %p84 = scmp.eq.s32.totalorder %s20, 1
      %p85 = por %p83, %p84
      %p86 = scmp.ne.s32.totalorder %s75, %s76
      %p87 = scmp.eq.s32.totalorder %s20, 0
      %p88 = por %p86, %p87
      %p89 = scmp.ne.s32.totalorder %s75, %s76
      %p90 = scmp.eq.s32.totalorder %s21, 1
      %p91 = por %p89, %p90
      %p93 = scmp.ne.s32.totalorder %s76, %s92
      %p94 = scmp.eq.s32.totalorder %s21, 0
      %p95 = por %p93, %p94
      %p96 = scmp.le.s32.totalorder 1, %s15
      %p97 = scmp.lt.s32.totalorder %s15, 3
      %p98 = pnand %p96, %p97
      %p99 = pneg %p98
      // Predicated region
      $region9: #{tpu_custom_call.1} parent=5 // pred_check
        _
      $region10: #{tpu_custom_call.1} parent=5 // pred_check_branch
        %101 = sbr.rel (%p98) target = $region12
      $region11: #{tpu_custom_call.1} parent=5 // pred_region
        %s102 = ssub.s32 %s15, 1
        // Predicated region
        $region13: #{tpu_custom_call.1} parent=11 // pred_check
          %p103 = pneg %p36
        $region14: #{tpu_custom_call.1} parent=11 // pred_check_branch
          %105 = sbr.rel (%p103) target = $region16
        $region15: #{tpu_custom_call.1} parent=11 // pred_region
          %s107 = ssub.s32 16, 16
          %108 = vsyncadd [#allocation7], %s107
          %111 = dma.hbm_to_smem %s0, 16, [#allocation4], [#allocation7]
        $region16: #{tpu_custom_call.1} parent=11 // pred_fallthru
          _
      $region12: #{tpu_custom_call.1} parent=5 // pred_fallthru
        _
      %p112 = scmp.lt.s32.totalorder %s15, 2
      // Predicated region
      $region17: #{tpu_custom_call.1} parent=5 // pred_check
        %p113 = pneg %p112
      $region18: #{tpu_custom_call.1} parent=5 // pred_check_branch
        %115 = sbr.rel (%p113) target = $region20
      $region19: #{tpu_custom_call.1} parent=5 // pred_region
        // Predicated region
        $region21: #{tpu_custom_call.1} parent=19 // pred_check
          %p116 = pneg %p56
        $region22: #{tpu_custom_call.1} parent=19 // pred_check_branch
          %118 = sbr.rel (%p116) target = $region24
        $region23: #{tpu_custom_call.1} parent=19 // pred_region
          %s119 = sand.u32 %s46, 1
          %s120 = scalar_lea.sflag [#allocation5], %s119
          %s121 = sand.u32 %s46, 1
          %s122 = smul.addr %s121, 64
          %s123 = scalar_lea.vmem [#allocation8], %s122
          %s124 = smul.u32 4, %s15
          %s126 = ssub.s32 1024, 1024
          %127 = vsyncadd %s120, %s126
          %s128 = smul.addr %s124, 2
          %s129 = smul.addr %s128, 128
          %s130 = scalar_lea.hbm %s1, %s129
          %s131 = sshll.u32 %s123, 4
          %s132 = int_to_ptr.vmem [resolvable:$true] %s131
          %137 = dma.hbm_to_vmem [thread:$0]  %s130, 1024, %s132, %s120, 128, 128, 8
        $region24: #{tpu_custom_call.1} parent=19 // pred_fallthru
          _
      $region20: #{tpu_custom_call.1} parent=5 // pred_fallthru
        _
      %p138 = scmp.le.s32.totalorder 1, %s15
      %p139 = scmp.lt.s32.totalorder %s15, 3
      %p140 = pnand %p138, %p139
      %p141 = pneg %p140
      // Predicated region
      $region25: #{tpu_custom_call.1} parent=5 // pred_check
        _
      $region26: #{tpu_custom_call.1} parent=5 // pred_check_branch
        %143 = sbr.rel (%p140) target = $region28
      $region27: #{tpu_custom_call.1} parent=5 // pred_region
        %s144 = ssub.s32 %s15, 1
        // Predicated region
        $region29: #{tpu_custom_call.1} parent=27 // pred_check
          %p145 = pneg %p36
        $region30: #{tpu_custom_call.1} parent=27 // pred_check_branch
          %147 = sbr.rel (%p145) target = $region32
        $region31: #{tpu_custom_call.1} parent=27 // pred_region
          %148 = dma.done [#allocation7], 16
        $region32: #{tpu_custom_call.1} parent=27 // pred_fallthru
          _
        %s149 = sand.u32 %s49, 1
        %s150 = scalar_lea.sflag [#allocation5], %s149
        %s151 = sand.u32 %s49, 1
        %s152 = smul.addr %s151, 64
        %s153 = scalar_lea.vmem [#allocation8], %s152
        // Predicated region
        $region33: #{tpu_custom_call.1} parent=27 // pred_check
          %p154 = pneg %p62
        $region34: #{tpu_custom_call.1} parent=27 // pred_check_branch
          %156 = sbr.rel (%p154) target = $region36
        $region35: #{tpu_custom_call.1} parent=27 // pred_region
          %157 = dma.done %s150, 1024
        $region36: #{tpu_custom_call.1} parent=27 // pred_fallthru
          _
        %158 = sfence
        %p159 = pneg %p36
        %p160 = pneg %p33
        %s161 = sand.u32 %s49, 1
        %s162 = scalar_lea.sflag [#allocation5], %s161
        %s163 = sand.u32 %s49, 1
        %s164 = smul.addr %s163, 64
        %s165 = scalar_lea.vmem [#allocation8], %s164
        %p166 = pneg %p62
        %p167 = pneg %p59
        %p168 = pneg %p88
        %p169 = pneg %p85
        %s170 = sand.u32 %s75, 1
        %s171 = scalar_lea.sflag [#allocation6], %s170
        %s172 = sand.u32 %s75, 1
        %s173 = smul.addr %s172, 64
        %s174 = scalar_lea.vmem [#allocation9], %s173
        %s175 = smul.u32 4, %s20
        %s176 = smul.u32 4, %s20
        %v177 = vld [vmem:[%s153] sm:$0xff]
        %v178 = vld [vmem:[%s153 + $0x8] sm:$0xff]
        %v179 = vld [vmem:[%s153 + $0x10] sm:$0xff]
        %v180 = vld [vmem:[%s153 + $0x18] sm:$0xff]
        %v181 = vld [vmem:[%s153 + $0x20] sm:$0xff]
        %v182 = vld [vmem:[%s153 + $0x28] sm:$0xff]
        %v183 = vld [vmem:[%s153 + $0x30] sm:$0xff]
        %v184 = vld [vmem:[%s153 + $0x38] sm:$0xff]
        %193 = vrot.lane.b32.xlu0 %v177, 5
        %v194 = vpop.permute.xlu0 %193
        %195 = vrot.lane.b32.xlu0 %v178, 5
        %v196 = vpop.permute.xlu0 %195
        %197 = vrot.lane.b32.xlu0 %v179, 5
        %v198 = vpop.permute.xlu0 %197
        %199 = vrot.lane.b32.xlu0 %v180, 5
        %v200 = vpop.permute.xlu0 %199
        %201 = vrot.lane.b32.xlu0 %v181, 5
        %v202 = vpop.permute.xlu0 %201
        %203 = vrot.lane.b32.xlu0 %v182, 5
        %v204 = vpop.permute.xlu0 %203
        %205 = vrot.lane.b32.xlu0 %v183, 5
        %v206 = vpop.permute.xlu0 %205
        %207 = vrot.lane.b32.xlu0 %v184, 5
        %v208 = vpop.permute.xlu0 %207
        %vm217 = vcmask 171048
        %218 = vst.msk [vmem:[#allocation2] sm:$0xff] %vm217, %v194
        %219 = vst.msk [vmem:[#allocation2 + $0x8] sm:$0xff] %vm217, %v196
        %220 = vst.msk [vmem:[#allocation2 + $0x10] sm:$0xff] %vm217, %v198
        %221 = vst.msk [vmem:[#allocation2 + $0x18] sm:$0xff] %vm217, %v200
        %222 = vst.msk [vmem:[#allocation2 + $0x20] sm:$0xff] %vm217, %v202
        %223 = vst.msk [vmem:[#allocation2 + $0x28] sm:$0xff] %vm217, %v204
        %224 = vst.msk [vmem:[#allocation2 + $0x30] sm:$0xff] %vm217, %v206
        %225 = vst.msk [vmem:[#allocation2 + $0x38] sm:$0xff] %vm217, %v208
        %v226 = vld [vmem:[%s153] sm:$0xff]
        %v227 = vld [vmem:[%s153 + $0x8] sm:$0xff]
        %v228 = vld [vmem:[%s153 + $0x10] sm:$0xff]
        %v229 = vld [vmem:[%s153 + $0x18] sm:$0xff]
        %v230 = vld [vmem:[%s153 + $0x20] sm:$0xff]
        %v231 = vld [vmem:[%s153 + $0x28] sm:$0xff]
        %v232 = vld [vmem:[%s153 + $0x30] sm:$0xff]
        %v233 = vld [vmem:[%s153 + $0x38] sm:$0xff]
        %235 = vset.pattern.permute.xlu0 0
        %236 = vperm.xlu0 %235, %v226
        %v237 = vpop.permute.xlu0 %236
        %240 = vset.pattern.permute.xlu0 0
        %241 = vperm.xlu0 %240, %v227
        %v242 = vpop.permute.xlu0 %241
        %245 = vset.pattern.permute.xlu0 0
        %246 = vperm.xlu0 %245, %v228
        %v247 = vpop.permute.xlu0 %246
        %250 = vset.pattern.permute.xlu0 0
        %251 = vperm.xlu0 %250, %v229
        %v252 = vpop.permute.xlu0 %251
        %255 = vset.pattern.permute.xlu0 0
        %256 = vperm.xlu0 %255, %v230
        %v257 = vpop.permute.xlu0 %256
        %260 = vset.pattern.permute.xlu0 0
        %261 = vperm.xlu0 %260, %v231
        %v262 = vpop.permute.xlu0 %261
        %265 = vset.pattern.permute.xlu0 0
        %266 = vperm.xlu0 %265, %v232
        %v267 = vpop.permute.xlu0 %266
        %270 = vset.pattern.permute.xlu0 0
        %271 = vperm.xlu0 %270, %v233
        %v272 = vpop.permute.xlu0 %271
        %vm274 = vcmask 39936
        %275 = vst.msk [vmem:[#allocation2] sm:$0xff] %vm274, %v237
        %276 = vst.msk [vmem:[#allocation2 + $0x8] sm:$0xff] %vm274, %v242
        %277 = vst.msk [vmem:[#allocation2 + $0x10] sm:$0xff] %vm274, %v247
        %278 = vst.msk [vmem:[#allocation2 + $0x18] sm:$0xff] %vm274, %v252
        %279 = vst.msk [vmem:[#allocation2 + $0x20] sm:$0xff] %vm274, %v257
        %280 = vst.msk [vmem:[#allocation2 + $0x28] sm:$0xff] %vm274, %v262
        %281 = vst.msk [vmem:[#allocation2 + $0x30] sm:$0xff] %vm274, %v267
        %282 = vst.msk [vmem:[#allocation2 + $0x38] sm:$0xff] %vm274, %v272
        %v283 = vld [vmem:[%s153] sm:$0xff]
        %v284 = vld [vmem:[%s153 + $0x8] sm:$0xff]
        %v285 = vld [vmem:[%s153 + $0x10] sm:$0xff]
        %v286 = vld [vmem:[%s153 + $0x18] sm:$0xff]
        %v287 = vld [vmem:[%s153 + $0x20] sm:$0xff]
        %v288 = vld [vmem:[%s153 + $0x28] sm:$0xff]
        %v289 = vld [vmem:[%s153 + $0x30] sm:$0xff]
        %v290 = vld [vmem:[%s153 + $0x38] sm:$0xff]
        %292 = vset.pattern.permute.xlu0 15
        %293 = vperm.xlu0 %292, %v283
        %v294 = vpop.permute.xlu0 %293
        %297 = vset.pattern.permute.xlu0 15
        %298 = vperm.xlu0 %297, %v284
        %v299 = vpop.permute.xlu0 %298
        %302 = vset.pattern.permute.xlu0 15
        %303 = vperm.xlu0 %302, %v285
        %v304 = vpop.permute.xlu0 %303
        %307 = vset.pattern.permute.xlu0 15
        %308 = vperm.xlu0 %307, %v286
        %v309 = vpop.permute.xlu0 %308
        %312 = vset.pattern.permute.xlu0 15
        %313 = vperm.xlu0 %312, %v287
        %v314 = vpop.permute.xlu0 %313
        %317 = vset.pattern.permute.xlu0 15
        %318 = vperm.xlu0 %317, %v288
        %v319 = vpop.permute.xlu0 %318
        %322 = vset.pattern.permute.xlu0 15
        %323 = vperm.xlu0 %322, %v289
        %v324 = vpop.permute.xlu0 %323
        %327 = vset.pattern.permute.xlu0 15
        %328 = vperm.xlu0 %327, %v290
        %v329 = vpop.permute.xlu0 %328
        %vm331 = vcmask 212136
        %332 = vst.msk [vmem:[#allocation2] sm:$0xff] %vm331, %v294
        %333 = vst.msk [vmem:[#allocation2 + $0x8] sm:$0xff] %vm331, %v299
        %334 = vst.msk [vmem:[#allocation2 + $0x10] sm:$0xff] %vm331, %v304
        %335 = vst.msk [vmem:[#allocation2 + $0x18] sm:$0xff] %vm331, %v309
        %336 = vst.msk [vmem:[#allocation2 + $0x20] sm:$0xff] %vm331, %v314
        %337 = vst.msk [vmem:[#allocation2 + $0x28] sm:$0xff] %vm331, %v319
        %338 = vst.msk [vmem:[#allocation2 + $0x30] sm:$0xff] %vm331, %v324
        %339 = vst.msk [vmem:[#allocation2 + $0x38] sm:$0xff] %vm331, %v329
        %v340 = vld [vmem:[#allocation2] sm:$0xff]
        %v341 = vld [vmem:[#allocation2 + $0x8] sm:$0xff]
        %v342 = vld [vmem:[#allocation2 + $0x10] sm:$0xff]
        %v343 = vld [vmem:[#allocation2 + $0x18] sm:$0xff]
        %v344 = vld [vmem:[#allocation2 + $0x20] sm:$0xff]
        %v345 = vld [vmem:[#allocation2 + $0x28] sm:$0xff]
        %v346 = vld [vmem:[#allocation2 + $0x30] sm:$0xff]
        %v347 = vld [vmem:[#allocation2 + $0x38] sm:$0xff]
        %v348 = vmul.f32 %v340, 0.023336891
        %v349 = vmul.f32 %v341, 0.023336891
        %v350 = vmul.f32 %v342, 0.023336891
        %v351 = vmul.f32 %v343, 0.023336891
        %v352 = vmul.f32 %v344, 0.023336891
        %v353 = vmul.f32 %v345, 0.023336891
        %v354 = vmul.f32 %v346, 0.023336891
        %v355 = vmul.f32 %v347, 0.023336891
        %v356 = vadd.f32 %v348, 0.0
        %v357 = vadd.f32 %v349, 0.0
        %v358 = vadd.f32 %v350, 0.0
        %v359 = vadd.f32 %v351, 0.0
        %v360 = vadd.f32 %v352, 0.0
        %v361 = vadd.f32 %v353, 0.0
        %v362 = vadd.f32 %v354, 0.0
        %v363 = vadd.f32 %v355, 0.0
        %v364 = vmul.f32 %v340, 0.07188269
        %v365 = vmul.f32 %v341, 0.07188269
        %v366 = vmul.f32 %v342, 0.07188269
        %v367 = vmul.f32 %v343, 0.07188269
        %v368 = vmul.f32 %v344, 0.07188269
        %v369 = vmul.f32 %v345, 0.07188269
        %v370 = vmul.f32 %v346, 0.07188269
        %v371 = vmul.f32 %v347, 0.07188269
        %v372 = vadd.f32 %v364, 0.0
        %v373 = vadd.f32 %v365, 0.0
        %v374 = vadd.f32 %v366, 0.0
        %v375 = vadd.f32 %v367, 0.0
        %v376 = vadd.f32 %v368, 0.0
        %v377 = vadd.f32 %v369, 0.0
        %v378 = vadd.f32 %v370, 0.0
        %v379 = vadd.f32 %v371, 0.0
        %v380 = vmul.f32 %v340, 0.17243761
        %v381 = vmul.f32 %v341, 0.17243761
        %v382 = vmul.f32 %v342, 0.17243761
        %v383 = vmul.f32 %v343, 0.17243761
        %v384 = vmul.f32 %v344, 0.17243761
        %v385 = vmul.f32 %v345, 0.17243761
        %v386 = vmul.f32 %v346, 0.17243761
        %v387 = vmul.f32 %v347, 0.17243761
        %396 = vrot.lane.b32.xlu0 %v380, 126
        %v397 = vpop.permute.xlu0 %396
        %398 = vrot.lane.b32.xlu0 %v381, 126
        %v399 = vpop.permute.xlu0 %398
        %400 = vrot.lane.b32.xlu0 %v382, 126
        %v401 = vpop.permute.xlu0 %400
        %402 = vrot.lane.b32.xlu0 %v383, 126
        %v403 = vpop.permute.xlu0 %402
        %404 = vrot.lane.b32.xlu0 %v384, 126
        %v405 = vpop.permute.xlu0 %404
        %406 = vrot.lane.b32.xlu0 %v385, 126
        %v407 = vpop.permute.xlu0 %406
        %408 = vrot.lane.b32.xlu0 %v386, 126
        %v409 = vpop.permute.xlu0 %408
        %410 = vrot.lane.b32.xlu0 %v387, 126
        %v411 = vpop.permute.xlu0 %410
        %v420 = vadd.f32 %v356, %v397
        %v421 = vadd.f32 %v357, %v399
        %v422 = vadd.f32 %v358, %v401
        %v423 = vadd.f32 %v359, %v403
        %v424 = vadd.f32 %v360, %v405
        %v425 = vadd.f32 %v361, %v407
        %v426 = vadd.f32 %v362, %v409
        %v427 = vadd.f32 %v363, %v411
        %v428 = vmul.f32 %v340, 0.32215583
        %v429 = vmul.f32 %v341, 0.32215583
        %v430 = vmul.f32 %v342, 0.32215583
        %v431 = vmul.f32 %v343, 0.32215583
        %v432 = vmul.f32 %v344, 0.32215583
        %v433 = vmul.f32 %v345, 0.32215583
        %v434 = vmul.f32 %v346, 0.32215583
        %v435 = vmul.f32 %v347, 0.32215583
        %444 = vrot.lane.b32.xlu0 %v428, 126
        %v445 = vpop.permute.xlu0 %444
        %446 = vrot.lane.b32.xlu0 %v429, 126
        %v447 = vpop.permute.xlu0 %446
        %448 = vrot.lane.b32.xlu0 %v430, 126
        %v449 = vpop.permute.xlu0 %448
        %450 = vrot.lane.b32.xlu0 %v431, 126
        %v451 = vpop.permute.xlu0 %450
        %452 = vrot.lane.b32.xlu0 %v432, 126
        %v453 = vpop.permute.xlu0 %452
        %454 = vrot.lane.b32.xlu0 %v433, 126
        %v455 = vpop.permute.xlu0 %454
        %456 = vrot.lane.b32.xlu0 %v434, 126
        %v457 = vpop.permute.xlu0 %456
        %458 = vrot.lane.b32.xlu0 %v435, 126
        %v459 = vpop.permute.xlu0 %458
        %v468 = vadd.f32 %v372, %v445
        %v469 = vadd.f32 %v373, %v447
        %v470 = vadd.f32 %v374, %v449
        %v471 = vadd.f32 %v375, %v451
        %v472 = vadd.f32 %v376, %v453
        %v473 = vadd.f32 %v377, %v455
        %v474 = vadd.f32 %v378, %v457
        %v475 = vadd.f32 %v379, %v459
        %v476 = vmul.f32 %v340, 0.468734
        %v477 = vmul.f32 %v341, 0.468734
        %v478 = vmul.f32 %v342, 0.468734
        %v479 = vmul.f32 %v343, 0.468734
        %v480 = vmul.f32 %v344, 0.468734
        %v481 = vmul.f32 %v345, 0.468734
        %v482 = vmul.f32 %v346, 0.468734
        %v483 = vmul.f32 %v347, 0.468734
        %492 = vrot.lane.b32.xlu0 %v476, 124
        %v493 = vpop.permute.xlu0 %492
        %494 = vrot.lane.b32.xlu0 %v477, 124
        %v495 = vpop.permute.xlu0 %494
        %496 = vrot.lane.b32.xlu0 %v478, 124
        %v497 = vpop.permute.xlu0 %496
        %498 = vrot.lane.b32.xlu0 %v479, 124
        %v499 = vpop.permute.xlu0 %498
        %500 = vrot.lane.b32.xlu0 %v480, 124
        %v501 = vpop.permute.xlu0 %500
        %502 = vrot.lane.b32.xlu0 %v481, 124
        %v503 = vpop.permute.xlu0 %502
        %504 = vrot.lane.b32.xlu0 %v482, 124
        %v505 = vpop.permute.xlu0 %504
        %506 = vrot.lane.b32.xlu0 %v483, 124
        %v507 = vpop.permute.xlu0 %506
        %v516 = vadd.f32 %v420, %v493
        %v517 = vadd.f32 %v421, %v495
        %v518 = vadd.f32 %v422, %v497
        %v519 = vadd.f32 %v423, %v499
        %v520 = vadd.f32 %v424, %v501
        %v521 = vadd.f32 %v425, %v503
        %v522 = vadd.f32 %v426, %v505
        %v523 = vadd.f32 %v427, %v507
        %v524 = vmul.f32 %v340, 0.5311452
        %v525 = vmul.f32 %v341, 0.5311452
        %v526 = vmul.f32 %v342, 0.5311452
        %v527 = vmul.f32 %v343, 0.5311452
        %v528 = vmul.f32 %v344, 0.5311452
        %v529 = vmul.f32 %v345, 0.5311452
        %v530 = vmul.f32 %v346, 0.5311452
        %v531 = vmul.f32 %v347, 0.5311452
        %540 = vrot.lane.b32.xlu0 %v524, 124
        %v541 = vpop.permute.xlu0 %540
        %542 = vrot.lane.b32.xlu0 %v525, 124
        %v543 = vpop.permute.xlu0 %542
        %544 = vrot.lane.b32.xlu0 %v526, 124
        %v545 = vpop.permute.xlu0 %544
        %546 = vrot.lane.b32.xlu0 %v527, 124
        %v547 = vpop.permute.xlu0 %546
        %548 = vrot.lane.b32.xlu0 %v528, 124
        %v549 = vpop.permute.xlu0 %548
        %550 = vrot.lane.b32.xlu0 %v529, 124
        %v551 = vpop.permute.xlu0 %550
        %552 = vrot.lane.b32.xlu0 %v530, 124
        %v553 = vpop.permute.xlu0 %552
        %554 = vrot.lane.b32.xlu0 %v531, 124
        %v555 = vpop.permute.xlu0 %554
        %v564 = vadd.f32 %v468, %v541
        %v565 = vadd.f32 %v469, %v543
        %v566 = vadd.f32 %v470, %v545
        %v567 = vadd.f32 %v471, %v547
        %v568 = vadd.f32 %v472, %v549
        %v569 = vadd.f32 %v473, %v551
        %v570 = vadd.f32 %v474, %v553
        %v571 = vadd.f32 %v475, %v555
        %572 = vrot.lane.b32.xlu0 %v476, 122
        %v573 = vpop.permute.xlu0 %572
        %574 = vrot.lane.b32.xlu0 %v477, 122
        %v575 = vpop.permute.xlu0 %574
        %576 = vrot.lane.b32.xlu0 %v478, 122
        %v577 = vpop.permute.xlu0 %576
        %578 = vrot.lane.b32.xlu0 %v479, 122
        %v579 = vpop.permute.xlu0 %578
        %580 = vrot.lane.b32.xlu0 %v480, 122
        %v581 = vpop.permute.xlu0 %580
        %582 = vrot.lane.b32.xlu0 %v481, 122
        %v583 = vpop.permute.xlu0 %582
        %584 = vrot.lane.b32.xlu0 %v482, 122
        %v585 = vpop.permute.xlu0 %584
        %586 = vrot.lane.b32.xlu0 %v483, 122
        %v587 = vpop.permute.xlu0 %586
        %v596 = vadd.f32 %v516, %v573
        %v597 = vadd.f32 %v517, %v575
        %v598 = vadd.f32 %v518, %v577
        %v599 = vadd.f32 %v519, %v579
        %v600 = vadd.f32 %v520, %v581
        %v601 = vadd.f32 %v521, %v583
        %v602 = vadd.f32 %v522, %v585
        %v603 = vadd.f32 %v523, %v587
        %604 = vrot.lane.b32.xlu0 %v428, 122
        %v605 = vpop.permute.xlu0 %604
        %606 = vrot.lane.b32.xlu0 %v429, 122
        %v607 = vpop.permute.xlu0 %606
        %608 = vrot.lane.b32.xlu0 %v430, 122
        %v609 = vpop.permute.xlu0 %608
        %610 = vrot.lane.b32.xlu0 %v431, 122
        %v611 = vpop.permute.xlu0 %610
        %612 = vrot.lane.b32.xlu0 %v432, 122
        %v613 = vpop.permute.xlu0 %612
        %614 = vrot.lane.b32.xlu0 %v433, 122
        %v615 = vpop.permute.xlu0 %614
        %616 = vrot.lane.b32.xlu0 %v434, 122
        %v617 = vpop.permute.xlu0 %616
        %618 = vrot.lane.b32.xlu0 %v435, 122
        %v619 = vpop.permute.xlu0 %618
        %v628 = vadd.f32 %v564, %v605
        %v629 = vadd.f32 %v565, %v607
        %v630 = vadd.f32 %v566, %v609
        %v631 = vadd.f32 %v567, %v611
        %v632 = vadd.f32 %v568, %v613
        %v633 = vadd.f32 %v569, %v615
        %v634 = vadd.f32 %v570, %v617
        %v635 = vadd.f32 %v571, %v619
        %636 = vrot.lane.b32.xlu0 %v380, 120
        %v637 = vpop.permute.xlu0 %636
        %638 = vrot.lane.b32.xlu0 %v381, 120
        %v639 = vpop.permute.xlu0 %638
        %640 = vrot.lane.b32.xlu0 %v382, 120
        %v641 = vpop.permute.xlu0 %640
        %642 = vrot.lane.b32.xlu0 %v383, 120
        %v643 = vpop.permute.xlu0 %642
        %644 = vrot.lane.b32.xlu0 %v384, 120
        %v645 = vpop.permute.xlu0 %644
        %646 = vrot.lane.b32.xlu0 %v385, 120
        %v647 = vpop.permute.xlu0 %646
        %648 = vrot.lane.b32.xlu0 %v386, 120
        %v649 = vpop.permute.xlu0 %648
        %650 = vrot.lane.b32.xlu0 %v387, 120
        %v651 = vpop.permute.xlu0 %650
        %v660 = vadd.f32 %v596, %v637
        %v661 = vadd.f32 %v597, %v639
        %v662 = vadd.f32 %v598, %v641
        %v663 = vadd.f32 %v599, %v643
        %v664 = vadd.f32 %v600, %v645
        %v665 = vadd.f32 %v601, %v647
        %v666 = vadd.f32 %v602, %v649
        %v667 = vadd.f32 %v603, %v651
        %676 = vrot.lane.b32.xlu0 %v364, 120
        %v677 = vpop.permute.xlu0 %676
        %678 = vrot.lane.b32.xlu0 %v365, 120
        %v679 = vpop.permute.xlu0 %678
        %680 = vrot.lane.b32.xlu0 %v366, 120
        %v681 = vpop.permute.xlu0 %680
        %682 = vrot.lane.b32.xlu0 %v367, 120
        %v683 = vpop.permute.xlu0 %682
        %684 = vrot.lane.b32.xlu0 %v368, 120
        %v685 = vpop.permute.xlu0 %684
        %686 = vrot.lane.b32.xlu0 %v369, 120
        %v687 = vpop.permute.xlu0 %686
        %688 = vrot.lane.b32.xlu0 %v370, 120
        %v689 = vpop.permute.xlu0 %688
        %690 = vrot.lane.b32.xlu0 %v371, 120
        %v691 = vpop.permute.xlu0 %690
        %v700 = vadd.f32 %v628, %v677
        %v701 = vadd.f32 %v629, %v679
        %v702 = vadd.f32 %v630, %v681
        %v703 = vadd.f32 %v631, %v683
        %v704 = vadd.f32 %v632, %v685
        %v705 = vadd.f32 %v633, %v687
        %v706 = vadd.f32 %v634, %v689
        %v707 = vadd.f32 %v635, %v691
        %716 = vrot.lane.b32.xlu0 %v348, 118
        %v717 = vpop.permute.xlu0 %716
        %718 = vrot.lane.b32.xlu0 %v349, 118
        %v719 = vpop.permute.xlu0 %718
        %720 = vrot.lane.b32.xlu0 %v350, 118
        %v721 = vpop.permute.xlu0 %720
        %722 = vrot.lane.b32.xlu0 %v351, 118
        %v723 = vpop.permute.xlu0 %722
        %724 = vrot.lane.b32.xlu0 %v352, 118
        %v725 = vpop.permute.xlu0 %724
        %726 = vrot.lane.b32.xlu0 %v353, 118
        %v727 = vpop.permute.xlu0 %726
        %728 = vrot.lane.b32.xlu0 %v354, 118
        %v729 = vpop.permute.xlu0 %728
        %730 = vrot.lane.b32.xlu0 %v355, 118
        %v731 = vpop.permute.xlu0 %730
        %v740 = vadd.f32 %v660, %v717
        %v741 = vadd.f32 %v661, %v719
        %v742 = vadd.f32 %v662, %v721
        %v743 = vadd.f32 %v663, %v723
        %v744 = vadd.f32 %v664, %v725
        %v745 = vadd.f32 %v665, %v727
        %v746 = vadd.f32 %v666, %v729
        %v747 = vadd.f32 %v667, %v731
        %756 = vrot.lane.b32.xlu0 %v700, 127
        %v757 = vpop.permute.xlu0 %756
        %758 = vrot.lane.b32.xlu0 %v701, 127
        %v759 = vpop.permute.xlu0 %758
        %760 = vrot.lane.b32.xlu0 %v702, 127
        %v761 = vpop.permute.xlu0 %760
        %762 = vrot.lane.b32.xlu0 %v703, 127
        %v763 = vpop.permute.xlu0 %762
        %764 = vrot.lane.b32.xlu0 %v704, 127
        %v765 = vpop.permute.xlu0 %764
        %766 = vrot.lane.b32.xlu0 %v705, 127
        %v767 = vpop.permute.xlu0 %766
        %768 = vrot.lane.b32.xlu0 %v706, 127
        %v769 = vpop.permute.xlu0 %768
        %770 = vrot.lane.b32.xlu0 %v707, 127
        %v771 = vpop.permute.xlu0 %770
        %v780 = vadd.f32 %v740, %v757
        %v781 = vadd.f32 %v741, %v759
        %v782 = vadd.f32 %v742, %v761
        %v783 = vadd.f32 %v743, %v763
        %v784 = vadd.f32 %v744, %v765
        %v785 = vadd.f32 %v745, %v767
        %v786 = vadd.f32 %v746, %v769
        %v787 = vadd.f32 %v747, %v771
        %vm788 = vcmask 130048
        %789 = vst.msk [vmem:[#allocation3 + $0x5] sm:$0xff] %vm788, %v780
        %790 = vst.msk [vmem:[#allocation3 + $0xd] sm:$0xff] %vm788, %v781
        %791 = vst.msk [vmem:[#allocation3 + $0x25] sm:$0xff] %vm788, %v782
        %792 = vst.msk [vmem:[#allocation3 + $0x2d] sm:$0xff] %vm788, %v783
        %793 = vst.msk [vmem:[#allocation3 + $0x45] sm:$0xff] %vm788, %v784
        %794 = vst.msk [vmem:[#allocation3 + $0x4d] sm:$0xff] %vm788, %v785
        %795 = vst.msk [vmem:[#allocation3 + $0x65] sm:$0xff] %vm788, %v786
        %796 = vst.msk [vmem:[#allocation3 + $0x6d] sm:$0xff] %vm788, %v787
        %v797 = vld [vmem:[#allocation3 + $0x5] sm:$0x1]
        %v798 = vld [vmem:[#allocation3 + $0x25] sm:$0x1]
        %v799 = vld [vmem:[#allocation3 + $0x45] sm:$0x1]
        %v800 = vld [vmem:[#allocation3 + $0x65] sm:$0x1]
        %v801 = vlaneseq
        %v802 = vshrl.u32 %v801, 7
        %v803 = vsub.s32 0, %v802
        %v804 = vrot.slane %v797, %v803
        %v805 = vlaneseq
        %v806 = vshrl.u32 %v805, 7
        %v807 = vsub.s32 0, %v806
        %v808 = vrot.slane %v798, %v807
        %v809 = vlaneseq
        %v810 = vshrl.u32 %v809, 7
        %v811 = vsub.s32 0, %v810
        %v812 = vrot.slane %v799, %v811
        %v813 = vlaneseq
        %v814 = vshrl.u32 %v813, 7
        %v815 = vsub.s32 0, %v814
        %v816 = vrot.slane %v800, %v815
        %vm817 = vcmask 126976
        %818 = vst.msk [vmem:[#allocation3] sm:$0x1f] %vm817, %v804
        %819 = vst.msk [vmem:[#allocation3 + $0x20] sm:$0x1f] %vm817, %v808
        %820 = vst.msk [vmem:[#allocation3 + $0x40] sm:$0x1f] %vm817, %v812
        %821 = vst.msk [vmem:[#allocation3 + $0x60] sm:$0x1f] %vm817, %v816
        %v822 = vld [vmem:[#allocation3 + $0x14] sm:$0x1]
        %v823 = vld [vmem:[#allocation3 + $0x34] sm:$0x1]
        %v824 = vld [vmem:[#allocation3 + $0x54] sm:$0x1]
        %v825 = vld [vmem:[#allocation3 + $0x74] sm:$0x1]
        %v826 = vlaneseq
        %v827 = vshrl.u32 %v826, 7
        %v828 = vsub.s32 0, %v827
        %v829 = vrot.slane %v822, %v828
        %v830 = vlaneseq
        %v831 = vshrl.u32 %v830, 7
        %v832 = vsub.s32 0, %v831
        %v833 = vrot.slane %v823, %v832
        %v834 = vlaneseq
        %v835 = vshrl.u32 %v834, 7
        %v836 = vsub.s32 0, %v835
        %v837 = vrot.slane %v824, %v836
        %v838 = vlaneseq
        %v839 = vshrl.u32 %v838, 7
        %v840 = vsub.s32 0, %v839
        %v841 = vrot.slane %v825, %v840
        %842 = vst.msk [vmem:[#allocation3 + $0x15] sm:$0x1f] %vm817, %v829
        %843 = vst.msk [vmem:[#allocation3 + $0x35] sm:$0x1f] %vm817, %v833
        %844 = vst.msk [vmem:[#allocation3 + $0x55] sm:$0x1f] %vm817, %v837
        %845 = vst.msk [vmem:[#allocation3 + $0x75] sm:$0x1f] %vm817, %v841
        %v846 = vld [vmem:[#allocation3] sm:$0xff]
        %v847 = vld [vmem:[#allocation3 + $0x8] sm:$0xff]
        %v848 = vld [vmem:[#allocation3 + $0x20] sm:$0xff]
        %v849 = vld [vmem:[#allocation3 + $0x28] sm:$0xff]
        %v850 = vld [vmem:[#allocation3 + $0x40] sm:$0xff]
        %v851 = vld [vmem:[#allocation3 + $0x48] sm:$0xff]
        %v852 = vld [vmem:[#allocation3 + $0x60] sm:$0xff]
        %v853 = vld [vmem:[#allocation3 + $0x68] sm:$0xff]
        %v854 = vmul.f32 %v846, 0.0033275806
        %v855 = vmul.f32 %v847, 0.0033275806
        %v856 = vmul.f32 %v848, 0.0033275806
        %v857 = vmul.f32 %v849, 0.0033275806
        %v858 = vmul.f32 %v850, 0.0033275806
        %v859 = vmul.f32 %v851, 0.0033275806
        %v860 = vmul.f32 %v852, 0.0033275806
        %v861 = vmul.f32 %v853, 0.0033275806
        %v862 = vadd.f32 %v854, 0.0
        %v863 = vadd.f32 %v855, 0.0
        %v864 = vadd.f32 %v856, 0.0
        %v865 = vadd.f32 %v857, 0.0
        %v866 = vadd.f32 %v858, 0.0
        %v867 = vadd.f32 %v859, 0.0
        %v868 = vadd.f32 %v860, 0.0
        %v869 = vadd.f32 %v861, 0.0
        %v870 = vld [vmem:[#allocation3 + $0x1] sm:$0xff]
        %v871 = vld [vmem:[#allocation3 + $0x9] sm:$0xff]
        %v872 = vld [vmem:[#allocation3 + $0x21] sm:$0xff]
        %v873 = vld [vmem:[#allocation3 + $0x29] sm:$0xff]
        %v874 = vld [vmem:[#allocation3 + $0x41] sm:$0xff]
        %v875 = vld [vmem:[#allocation3 + $0x49] sm:$0xff]
        %v876 = vld [vmem:[#allocation3 + $0x61] sm:$0xff]
        %v877 = vld [vmem:[#allocation3 + $0x69] sm:$0xff]
        %v878 = vmul.f32 %v870, 0.01024967
        %v879 = vmul.f32 %v871, 0.01024967
        %v880 = vmul.f32 %v872, 0.01024967
        %v881 = vmul.f32 %v873, 0.01024967
        %v882 = vmul.f32 %v874, 0.01024967
        %v883 = vmul.f32 %v875, 0.01024967
        %v884 = vmul.f32 %v876, 0.01024967
        %v885 = vmul.f32 %v877, 0.01024967
        %v886 = vadd.f32 %v878, 0.0
        %v887 = vadd.f32 %v879, 0.0
        %v888 = vadd.f32 %v880, 0.0
        %v889 = vadd.f32 %v881, 0.0
        %v890 = vadd.f32 %v882, 0.0
        %v891 = vadd.f32 %v883, 0.0
        %v892 = vadd.f32 %v884, 0.0
        %v893 = vadd.f32 %v885, 0.0
        %v894 = vld [vmem:[#allocation3 + $0x2] sm:$0xff]
        %v895 = vld [vmem:[#allocation3 + $0xa] sm:$0xff]
        %v896 = vld [vmem:[#allocation3 + $0x22] sm:$0xff]
        %v897 = vld [vmem:[#allocation3 + $0x2a] sm:$0xff]
        %v898 = vld [vmem:[#allocation3 + $0x42] sm:$0xff]
        %v899 = vld [vmem:[#allocation3 + $0x4a] sm:$0xff]
        %v900 = vld [vmem:[#allocation3 + $0x62] sm:$0xff]
        %v901 = vld [vmem:[#allocation3 + $0x6a] sm:$0xff]
        %v902 = vmul.f32 %v894, 0.02458768
        %v903 = vmul.f32 %v895, 0.02458768
        %v904 = vmul.f32 %v896, 0.02458768
        %v905 = vmul.f32 %v897, 0.02458768
        %v906 = vmul.f32 %v898, 0.02458768
        %v907 = vmul.f32 %v899, 0.02458768
        %v908 = vmul.f32 %v900, 0.02458768
        %v909 = vmul.f32 %v901, 0.02458768
        %v910 = vadd.f32 %v862, %v902
        %v911 = vadd.f32 %v863, %v903
        %v912 = vadd.f32 %v864, %v904
        %v913 = vadd.f32 %v865, %v905
        %v914 = vadd.f32 %v866, %v906
        %v915 = vadd.f32 %v867, %v907
        %v916 = vadd.f32 %v868, %v908
        %v917 = vadd.f32 %v869, %v909
        %v918 = vld [vmem:[#allocation3 + $0x3] sm:$0xff]
        %v919 = vld [vmem:[#allocation3 + $0xb] sm:$0xff]
        %v920 = vld [vmem:[#allocation3 + $0x23] sm:$0xff]
        %v921 = vld [vmem:[#allocation3 + $0x2b] sm:$0xff]
        %v922 = vld [vmem:[#allocation3 + $0x43] sm:$0xff]
        %v923 = vld [vmem:[#allocation3 + $0x4b] sm:$0xff]
        %v924 = vld [vmem:[#allocation3 + $0x63] sm:$0xff]
        %v925 = vld [vmem:[#allocation3 + $0x6b] sm:$0xff]
        %v926 = vmul.f32 %v918, 0.045935832
        %v927 = vmul.f32 %v919, 0.045935832
        %v928 = vmul.f32 %v920, 0.045935832
        %v929 = vmul.f32 %v921, 0.045935832
        %v930 = vmul.f32 %v922, 0.045935832
        %v931 = vmul.f32 %v923, 0.045935832
        %v932 = vmul.f32 %v924, 0.045935832
        %v933 = vmul.f32 %v925, 0.045935832
        %v934 = vadd.f32 %v886, %v926
        %v935 = vadd.f32 %v887, %v927
        %v936 = vadd.f32 %v888, %v928
        %v937 = vadd.f32 %v889, %v929
        %v938 = vadd.f32 %v890, %v930
        %v939 = vadd.f32 %v891, %v931
        %v940 = vadd.f32 %v892, %v932
        %v941 = vadd.f32 %v893, %v933
        %v942 = vld [vmem:[#allocation3 + $0x4] sm:$0xff]
        %v943 = vld [vmem:[#allocation3 + $0xc] sm:$0xff]
        %v944 = vld [vmem:[#allocation3 + $0x24] sm:$0xff]
        %v945 = vld [vmem:[#allocation3 + $0x2c] sm:$0xff]
        %v946 = vld [vmem:[#allocation3 + $0x44] sm:$0xff]
        %v947 = vld [vmem:[#allocation3 + $0x4c] sm:$0xff]
        %v948 = vld [vmem:[#allocation3 + $0x64] sm:$0xff]
        %v949 = vld [vmem:[#allocation3 + $0x6c] sm:$0xff]
        %v950 = vmul.f32 %v942, 0.06683624
        %v951 = vmul.f32 %v943, 0.06683624
        %v952 = vmul.f32 %v944, 0.06683624
        %v953 = vmul.f32 %v945, 0.06683624
        %v954 = vmul.f32 %v946, 0.06683624
        %v955 = vmul.f32 %v947, 0.06683624
        %v956 = vmul.f32 %v948, 0.06683624
        %v957 = vmul.f32 %v949, 0.06683624
        %v958 = vadd.f32 %v910, %v950
        %v959 = vadd.f32 %v911, %v951
        %v960 = vadd.f32 %v912, %v952
        %v961 = vadd.f32 %v913, %v953
        %v962 = vadd.f32 %v914, %v954
        %v963 = vadd.f32 %v915, %v955
        %v964 = vadd.f32 %v916, %v956
        %v965 = vadd.f32 %v917, %v957
        %v966 = vld [vmem:[#allocation3 + $0x5] sm:$0xff]
        %v967 = vld [vmem:[#allocation3 + $0xd] sm:$0xff]
        %v968 = vld [vmem:[#allocation3 + $0x25] sm:$0xff]
        %v969 = vld [vmem:[#allocation3 + $0x2d] sm:$0xff]
        %v970 = vld [vmem:[#allocation3 + $0x45] sm:$0xff]
        %v971 = vld [vmem:[#allocation3 + $0x4d] sm:$0xff]
        %v972 = vld [vmem:[#allocation3 + $0x65] sm:$0xff]
        %v973 = vld [vmem:[#allocation3 + $0x6d] sm:$0xff]
        %v974 = vmul.f32 %v966, 0.07573538
        %v975 = vmul.f32 %v967, 0.07573538
        %v976 = vmul.f32 %v968, 0.07573538
        %v977 = vmul.f32 %v969, 0.07573538
        %v978 = vmul.f32 %v970, 0.07573538
        %v979 = vmul.f32 %v971, 0.07573538
        %v980 = vmul.f32 %v972, 0.07573538
        %v981 = vmul.f32 %v973, 0.07573538
        %v982 = vadd.f32 %v934, %v974
        %v983 = vadd.f32 %v935, %v975
        %v984 = vadd.f32 %v936, %v976
        %v985 = vadd.f32 %v937, %v977
        %v986 = vadd.f32 %v938, %v978
        %v987 = vadd.f32 %v939, %v979
        %v988 = vadd.f32 %v940, %v980
        %v989 = vadd.f32 %v941, %v981
        %v990 = vld [vmem:[#allocation3 + $0x6] sm:$0xff]
        %v991 = vld [vmem:[#allocation3 + $0xe] sm:$0xff]
        %v992 = vld [vmem:[#allocation3 + $0x26] sm:$0xff]
        %v993 = vld [vmem:[#allocation3 + $0x2e] sm:$0xff]
        %v994 = vld [vmem:[#allocation3 + $0x46] sm:$0xff]
        %v995 = vld [vmem:[#allocation3 + $0x4e] sm:$0xff]
        %v996 = vld [vmem:[#allocation3 + $0x66] sm:$0xff]
        %v997 = vld [vmem:[#allocation3 + $0x6e] sm:$0xff]
        %v998 = vmul.f32 %v990, 0.06683624
        %v999 = vmul.f32 %v991, 0.06683624
        %v1000 = vmul.f32 %v992, 0.06683624
        %v1001 = vmul.f32 %v993, 0.06683624
        %v1002 = vmul.f32 %v994, 0.06683624
        %v1003 = vmul.f32 %v995, 0.06683624
        %v1004 = vmul.f32 %v996, 0.06683624
        %v1005 = vmul.f32 %v997, 0.06683624
        %v1006 = vadd.f32 %v958, %v998
        %v1007 = vadd.f32 %v959, %v999
        %v1008 = vadd.f32 %v960, %v1000
        %v1009 = vadd.f32 %v961, %v1001
        %v1010 = vadd.f32 %v962, %v1002
        %v1011 = vadd.f32 %v963, %v1003
        %v1012 = vadd.f32 %v964, %v1004
        %v1013 = vadd.f32 %v965, %v1005
        %v1014 = vld [vmem:[#allocation3 + $0x7] sm:$0xff]
        %v1015 = vld [vmem:[#allocation3 + $0xf] sm:$0xff]
        %v1016 = vld [vmem:[#allocation3 + $0x27] sm:$0xff]
        %v1017 = vld [vmem:[#allocation3 + $0x2f] sm:$0xff]
        %v1018 = vld [vmem:[#allocation3 + $0x47] sm:$0xff]
        %v1019 = vld [vmem:[#allocation3 + $0x4f] sm:$0xff]
        %v1020 = vld [vmem:[#allocation3 + $0x67] sm:$0xff]
        %v1021 = vld [vmem:[#allocation3 + $0x6f] sm:$0xff]
        %v1022 = vmul.f32 %v1014, 0.045935832
        %v1023 = vmul.f32 %v1015, 0.045935832
        %v1024 = vmul.f32 %v1016, 0.045935832
        %v1025 = vmul.f32 %v1017, 0.045935832
        %v1026 = vmul.f32 %v1018, 0.045935832
        %v1027 = vmul.f32 %v1019, 0.045935832
        %v1028 = vmul.f32 %v1020, 0.045935832
        %v1029 = vmul.f32 %v1021, 0.045935832
        %v1030 = vadd.f32 %v982, %v1022
        %v1031 = vadd.f32 %v983, %v1023
        %v1032 = vadd.f32 %v984, %v1024
        %v1033 = vadd.f32 %v985, %v1025
        %v1034 = vadd.f32 %v986, %v1026
        %v1035 = vadd.f32 %v987, %v1027
        %v1036 = vadd.f32 %v988, %v1028
        %v1037 = vadd.f32 %v989, %v1029
        %v1038 = vld [vmem:[#allocation3 + $0x10] sm:$0xff]
        %v1039 = vld [vmem:[#allocation3 + $0x30] sm:$0xff]
        %v1040 = vld [vmem:[#allocation3 + $0x50] sm:$0xff]
        %v1041 = vld [vmem:[#allocation3 + $0x70] sm:$0xff]
        %v1042 = vmul.f32 %v847, 0.02458768
        %v1043 = vmul.f32 %v1038, 0.02458768
        %v1044 = vmul.f32 %v849, 0.02458768
        %v1045 = vmul.f32 %v1039, 0.02458768
        %v1046 = vmul.f32 %v851, 0.02458768
        %v1047 = vmul.f32 %v1040, 0.02458768
        %v1048 = vmul.f32 %v853, 0.02458768
        %v1049 = vmul.f32 %v1041, 0.02458768
        %v1050 = vadd.f32 %v1006, %v1042
        %v1051 = vadd.f32 %v1007, %v1043
        %v1052 = vadd.f32 %v1008, %v1044
        %v1053 = vadd.f32 %v1009, %v1045
        %v1054 = vadd.f32 %v1010, %v1046
        %v1055 = vadd.f32 %v1011, %v1047
        %v1056 = vadd.f32 %v1012, %v1048
        %v1057 = vadd.f32 %v1013, %v1049
        %v1058 = vld [vmem:[#allocation3 + $0x11] sm:$0xff]
        %v1059 = vld [vmem:[#allocation3 + $0x31] sm:$0xff]
        %v1060 = vld [vmem:[#allocation3 + $0x51] sm:$0xff]
        %v1061 = vld [vmem:[#allocation3 + $0x71] sm:$0xff]
        %v1062 = vmul.f32 %v1058, 0.01024967
        %v1063 = vmul.f32 %v1059, 0.01024967
        %v1064 = vmul.f32 %v1060, 0.01024967
        %v1065 = vmul.f32 %v1061, 0.01024967
        %v1066 = vadd.f32 %v1030, %v879
        %v1067 = vadd.f32 %v1031, %v1062
        %v1068 = vadd.f32 %v1032, %v881
        %v1069 = vadd.f32 %v1033, %v1063
        %v1070 = vadd.f32 %v1034, %v883
        %v1071 = vadd.f32 %v1035, %v1064
        %v1072 = vadd.f32 %v1036, %v885
        %v1073 = vadd.f32 %v1037, %v1065
        %v1074 = vld [vmem:[#allocation3 + $0x12] sm:$0xff]
        %v1075 = vld [vmem:[#allocation3 + $0x32] sm:$0xff]
        %v1076 = vld [vmem:[#allocation3 + $0x52] sm:$0xff]
        %v1077 = vld [vmem:[#allocation3 + $0x72] sm:$0xff]
        %v1078 = vmul.f32 %v895, 0.0033275806
        %v1079 = vmul.f32 %v1074, 0.0033275806
        %v1080 = vmul.f32 %v897, 0.0033275806
        %v1081 = vmul.f32 %v1075, 0.0033275806
        %v1082 = vmul.f32 %v899, 0.0033275806
        %v1083 = vmul.f32 %v1076, 0.0033275806
        %v1084 = vmul.f32 %v901, 0.0033275806
        %v1085 = vmul.f32 %v1077, 0.0033275806
        %v1086 = vadd.f32 %v1050, %v1078
        %v1087 = vadd.f32 %v1051, %v1079
        %v1088 = vadd.f32 %v1052, %v1080
        %v1089 = vadd.f32 %v1053, %v1081
        %v1090 = vadd.f32 %v1054, %v1082
        %v1091 = vadd.f32 %v1055, %v1083
        %v1092 = vadd.f32 %v1056, %v1084
        %v1093 = vadd.f32 %v1057, %v1085
        %v1094 = vadd.f32 %v1086, %v1066
        %v1095 = vadd.f32 %v1087, %v1067
        %v1096 = vadd.f32 %v1088, %v1068
        %v1097 = vadd.f32 %v1089, %v1069
        %v1098 = vadd.f32 %v1090, %v1070
        %v1099 = vadd.f32 %v1091, %v1071
        %v1100 = vadd.f32 %v1092, %v1072
        %v1101 = vadd.f32 %v1093, %v1073
        %s1102 = sld [smem:[#allocation4]]
        %v1103 = vstv %s1102
        %v1104 = vmul.f32 %v1103, %v1094
        %v1105 = vmul.f32 %v1103, %v1095
        %v1106 = vmul.f32 %v1103, %v1096
        %v1107 = vmul.f32 %v1103, %v1097
        %v1108 = vmul.f32 %v1103, %v1098
        %v1109 = vmul.f32 %v1103, %v1099
        %v1110 = vmul.f32 %v1103, %v1100
        %v1111 = vmul.f32 %v1103, %v1101
        %s1112 = sld [smem:[#allocation4 + $0x1]]
        %v1113 = vstv %s1112
        %v1114 = vadd.f32 %v1104, %v1113
        %v1115 = vadd.f32 %v1105, %v1113
        %v1116 = vadd.f32 %v1106, %v1113
        %v1117 = vadd.f32 %v1107, %v1113
        %v1118 = vadd.f32 %v1108, %v1113
        %v1119 = vadd.f32 %v1109, %v1113
        %v1120 = vadd.f32 %v1110, %v1113
        %v1121 = vadd.f32 %v1111, %v1113
        %1122 = vst.msk [vmem:[%s174] sm:$0xff] %vm788, %v1114
        %1123 = vst.msk [vmem:[%s174 + $0x8] sm:$0xff] %vm788, %v1115
        %1124 = vst.msk [vmem:[%s174 + $0x10] sm:$0xff] %vm788, %v1116
        %1125 = vst.msk [vmem:[%s174 + $0x18] sm:$0xff] %vm788, %v1117
        %1126 = vst.msk [vmem:[%s174 + $0x20] sm:$0xff] %vm788, %v1118
        %1127 = vst.msk [vmem:[%s174 + $0x28] sm:$0xff] %vm788, %v1119
        %1128 = vst.msk [vmem:[%s174 + $0x30] sm:$0xff] %vm788, %v1120
        %1129 = vst.msk [vmem:[%s174 + $0x38] sm:$0xff] %vm788, %v1121
        %s1130 = sand.u32 %s75, 1
        %s1131 = scalar_lea.sflag [#allocation6], %s1130
        %s1132 = sand.u32 %s75, 1
        %s1133 = smul.addr %s1132, 64
        %s1134 = scalar_lea.vmem [#allocation9], %s1133
        // Predicated region
        $region37: #{tpu_custom_call.1} parent=27 // pred_check
          %p1135 = pneg %p85
        $region38: #{tpu_custom_call.1} parent=27 // pred_check_branch
          %1137 = sbr.rel (%p1135) target = $region40
        $region39: #{tpu_custom_call.1} parent=27 // pred_region
          %s1138 = smul.u32 4, %s20
          %s1140 = ssub.s32 1024, 1024
          %1141 = vsyncadd %s1131, %s1140
          %s1142 = smul.addr %s1138, 2
          %s1143 = smul.addr %s1142, 128
          %s1144 = scalar_lea.hbm %s2, %s1143
          %s1145 = sshll.u32 %s1134, 4
          %s1146 = int_to_ptr.vmem [resolvable:$true] %s1145
          %1151 = dma.vmem_to_hbm [thread:$0]  %s1146, 1024, %s1144, %s1131, 128, 128, 8
        $region40: #{tpu_custom_call.1} parent=27 // pred_fallthru
          _
      $region28: #{tpu_custom_call.1} parent=5 // pred_fallthru
        _
      %p1152 = scmp.le.s32.totalorder 2, %s15
      // Predicated region
      $region41: #{tpu_custom_call.1} parent=5 // pred_check
        %p1153 = pneg %p1152
      $region42: #{tpu_custom_call.1} parent=5 // pred_check_branch
        %1155 = sbr.rel (%p1153) target = $region44
      $region43: #{tpu_custom_call.1} parent=5 // pred_region
        %s1156 = ssub.s32 %s15, 2
        // Predicated region
        $region45: #{tpu_custom_call.1} parent=43 // pred_check
          %p1157 = pneg %p91
        $region46: #{tpu_custom_call.1} parent=43 // pred_check_branch
          %1159 = sbr.rel (%p1157) target = $region48
        $region47: #{tpu_custom_call.1} parent=43 // pred_region
          %s1160 = sand.u32 %s76, 1
          %s1161 = scalar_lea.sflag [#allocation6], %s1160
          %s1162 = sand.u32 %s76, 1
          %s1163 = smul.addr %s1162, 64
          %s1164 = scalar_lea.vmem [#allocation9], %s1163
          %1165 = dma.done %s1161, 1024
        $region48: #{tpu_custom_call.1} parent=43 // pred_fallthru
          _
      $region44: #{tpu_custom_call.1} parent=5 // pred_fallthru
        _
    $region6: #{tpu_custom_call.1} parent=1 // loop_footer
      %s19 = sadd.s32 1, %s15
    $region7: #{tpu_custom_call.1} parent=1 // loop_footer_branch
      %14 = sbr.rel target = $region3
    $region8: #{tpu_custom_call.1} parent=1 // loop_exit
      _
    %1166 = vsyncpa [#allocation5], 1
    %s1167 = scalar_lea.sflag [#allocation5], 1
    %1168 = vsyncpa %s1167, 1
    %1169 = vsyncpa [#allocation6], 1
    %s1170 = scalar_lea.sflag [#allocation6], 1
    %1171 = vsyncpa %s1170, 1
    %1172 = vsyncpa [#allocation7], 1
    %s1173 = scalar_lea.sflag [#allocation7], 1
    %1174 = vsyncpa %s1173, 1

</llo_original>
